<compile_context>
chip_gen: v5e
topology: v5e:2x2
jax: 0.10.0
libtpu: 0.0.40
codegen_flags: <defaults>
</compile_context>

<pallas_src>
import functools

import jax
import jax.numpy as jnp
from jax.experimental import pallas as pl
from jax.experimental.pallas import tpu as pltpu

D_MODEL = 32
EPS = 1e-6
MIN_NORM = 1e-15
LANE = 128                  # TPU lane width
MAX_PACKED_TILE = 1024      # packed rows per grid step (= 4096 logical rows for d=32);
                            # ~1 MiB f32 block -> per-step overhead < 10%, tiny vs VMEM.
MIN_GRID_STEPS = 8          # keep the grid split-able across v7x's 2 TensorCores and
                            # give the BlockSpec pipeline some depth.
DOT_DTYPE = jnp.bfloat16    # MXU operand dtype for the segmented reductions: single-pass
                            # on v6e/v7x.  Set to jnp.float32 if bit-closeness to the
                            # fp32/fp64 PyTorch reference is required.


def _round_up(x, m):
    return (x + m - 1) // m * m


def _hyper_ln_kernel(x_ref, p_ref, seg_ref, rhs2_ref, o_ref, *, d, eps):
    """One (tile_p, lane) lane-dense block; each lane-row packs lane // d logical rows.

    Per-row reductions are segmented sums done as MXU matmuls against a resident
    block-diagonal 0/1 matrix `seg` (result is already broadcast back per segment).
    `rhs2 = diag(bias_tiled) @ seg` folds the Mobius <res, bias> inner product into a
    single extra matmul on `y`.  4 matmuls total per block.
    """
    x = x_ref[...].astype(jnp.float32)            # (T, L)
    seg = seg_ref[...]                            # (L, L) block-diagonal ones (DOT_DTYPE)
    rhs2 = rhs2_ref[...]                          # (L, L) diag(bias_tiled) @ seg
    gamma = p_ref[0:1, :]                         # (1, L) f32, tiled per segment
    beta = p_ref[1:2, :]
    bias = p_ref[2:3, :]
    y2 = p_ref[3:4, :]                            # sum(bias**2), broadcast across lanes

    def seg_sum(v):
        # Per-row, per-d-lane-segment sum, broadcast back across the segment (MXU).
        return jnp.dot(v.astype(seg.dtype), seg, preferred_element_type=jnp.float32)

    sx = seg_sum(x)                               # per-segment sum(x)
    sxx = seg_sum(x * x)                          # per-segment sum(x^2)

    # ---- logmap0 (k = -1):  tangent = artanh(||x||)/||x|| * x  ==  s * x ----
    nsq = jnp.maximum(sxx, MIN_NORM * MIN_NORM)
    inv_xn = jax.lax.rsqrt(nsq)                   # 1/||x|| (EUP), no separate sqrt+rcp
    x_norm = nsq * inv_xn                         # ||x||
    t = jnp.minimum(x_norm, 1.0 - 1e-7)           # artanh clamp (x_norm >= 0)
    # artanh(t) = 0.5*log1p(2t/(1-t)): one log + one approx rcp, and relative-accurate
    # for small t (unlike log((1+t)/(1-t)) with an approx rcp).
    artanh = 0.5 * jnp.log1p(2.0 * t * pl.reciprocal(1.0 - t, approx=True))
    s = artanh * inv_xn                           # segment-constant tangent scale

    # ---- layer norm in tangent space (unbiased std, ddof = 1) ----
    # tangent = s*x  =>  sum(tangent) = s*sx,  sum(tangent^2) = s^2*sxx
    mean = s * sx * (1.0 / d)
    var = jnp.maximum(s * s * sxx - d * (mean * mean), 0.0) * (1.0 / (d - 1))
    std = jnp.sqrt(var)
    normed = (s * x - mean) * pl.reciprocal(std + eps, approx=True)
    y = gamma * normed + beta

    # ---- expmap0 (k = -1) ----
    syy = jnp.maximum(seg_sum(y * y), MIN_NORM * MIN_NORM)
    inv_yn = jax.lax.rsqrt(syy)
    y_norm = syy * inv_yn
    th = jnp.tanh(y_norm)
    scale = th * inv_yn
    res = y * scale

    # ---- mobius_add(res, bias) with k = -1 ----
    # <res, bias> per segment = scale * (y @ diag(bias_tiled) @ seg)
    xy = scale * jnp.dot(y.astype(rhs2.dtype), rhs2, preferred_element_type=jnp.float32)
    r2 = th * th                                  # ||res||^2 == tanh(||y||)^2 by construction
    num = (1.0 + 2.0 * xy + y2) * res + (1.0 - r2) * bias
    den = jnp.maximum(1.0 + 2.0 * xy + r2 * y2, MIN_NORM)
    o_ref[...] = (num * pl.reciprocal(den, approx=True)).astype(o_ref.dtype)


def hyperbolic_layer_norm(x, gamma, beta, hyperbolic_bias, *, eps=EPS):
    """x: (..., d_model). Math in f32; I/O dtype follows the input (bf16 stays bf16)."""
    orig_shape = x.shape
    d = orig_shape[-1]
    io_dtype = jnp.bfloat16 if x.dtype == jnp.bfloat16 else jnp.float32
    x2d = x.reshape(-1, d).astype(io_dtype)
    n_rows = x2d.shape[0]

    # Pack `pack` logical rows per 128-lane row (lane-dense loads/stores).
    pack = LANE // d if (d <= LANE and LANE % d == 0) else 1
    lane = d * pack

    # Pad only to sublane granularity (decoupled from tile size); the partial last
    # grid block is masked by Pallas, so no tile-sized pad / slice HBM passes.
    align = 16 if io_dtype == jnp.bfloat16 else 8
    n_packed = -(-n_rows // pack)                                 # cdiv
    n_packed_a = _round_up(max(n_packed, 1), align)
    n_rows_pad = n_packed_a * pack
    if n_rows_pad != n_rows:
        # Zero rows are numerically safe (norms clamped to MIN_NORM); sliced off below.
        x2d = jnp.pad(x2d, ((0, n_rows_pad - n_rows), (0, 0)))
    x_packed = x2d.reshape(n_packed_a, lane)

    # Tile: as large as MAX_PACKED_TILE, but small enough that the grid has at least
    # MIN_GRID_STEPS steps (so both v7x TensorCores get work under "parallel").
    tile_p = min(MAX_PACKED_TILE,
                 _round_up(pl.cdiv(n_packed_a, MIN_GRID_STEPS), align))
    grid = pl.cdiv(n_packed_a, tile_p)

    # Fused resident parameters: gamma/beta/bias tiled per segment + sum(bias^2).
    g32 = gamma.reshape(1, d).astype(jnp.float32)
    b32 = beta.reshape(1, d).astype(jnp.float32)
    hb32 = hyperbolic_bias.reshape(1, d).astype(jnp.float32)
    y2 = jnp.sum(hb32 * hb32)                                     # hoisted per-call constant
    params = jnp.concatenate(
        [jnp.tile(g32, (1, pack)),
         jnp.tile(b32, (1, pack)),
         jnp.tile(hb32, (1, pack)),
         jnp.full((1, lane), y2, dtype=jnp.float32),
         jnp.zeros((4, lane), dtype=jnp.float32)], axis=0)        # (8, lane), resident

    # Block-diagonal ones: seg[i, j] = 1 iff lanes i and j belong to the same logical row.
    ii = jnp.arange(lane)[:, None] // d
    jj = jnp.arange(lane)[None, :] // d
    seg_f32 = (ii == jj).astype(jnp.float32)                      # (lane, lane), resident
    seg = seg_f32.astype(DOT_DTYPE)
    bias_col = jnp.tile(hb32, (1, pack)).reshape(lane, 1)
    rhs2 = (bias_col * seg_f32).astype(DOT_DTYPE)                 # diag(bias_tiled) @ seg

    kernel = functools.partial(_hyper_ln_kernel, d=d, eps=eps)
    out = pl.pallas_call(
        kernel,
        out_shape=jax.ShapeDtypeStruct((n_packed_a, lane), io_dtype),
        grid_spec=pltpu.PrefetchScalarGridSpec(
            num_scalar_prefetch=0,
            grid=(grid,),
            in_specs=[
                pl.BlockSpec((tile_p, lane), lambda i: (i, 0)),
                pl.BlockSpec((8, lane), lambda i: (0, 0)),
                pl.BlockSpec((lane, lane), lambda i: (0, 0)),
                pl.BlockSpec((lane, lane), lambda i: (0, 0)),
            ],
            out_specs=pl.BlockSpec((tile_p, lane), lambda i: (i, 0)),
        ),
        compiler_params=pltpu.CompilerParams(
            dimension_semantics=("parallel",),
            # Explicit guard for v5e's 16 MiB scoped-VMEM default with the larger
            # tiles; v6e/v7x defaults are already at/above this.
            vmem_limit_bytes=32 * 1024 * 1024),
    )(x_packed, params, seg, rhs2)

    out = out.reshape(n_rows_pad, d)[:n_rows]
    return out.reshape(orig_shape)


def _expmap0_host(u):
    """Plain-JAX expmap0 (k=-1), only for deterministic parameter init."""
    n = jnp.maximum(jnp.sqrt(jnp.sum(u * u, axis=-1, keepdims=True)), MIN_NORM)
    return jnp.tanh(n) * u / n


if __name__ == "__main__":
    key = jax.random.PRNGKey(0)
    k_x, k_bias = jax.random.split(key)

    batch, seq, d_model = 2, 8, D_MODEL

    # Points inside the Poincare ball (norm < 1).
    x = 0.1 * jax.random.normal(k_x, (batch, seq, d_model), dtype=jnp.float32)

    # Deterministic parameter init matching the module's __init__.
    gamma = jnp.ones((d_model,), dtype=jnp.float32)
    beta = jnp.zeros((d_model,), dtype=jnp.float32)
    hyperbolic_bias = _expmap0_host(
        0.01 * jax.random.normal(k_bias, (d_model,), dtype=jnp.float32))

    out = hyperbolic_layer_norm(x, gamma, beta, hyperbolic_bias)
    jax.block_until_ready(out)
    assert out.shape == x.shape and out.dtype == jnp.float32
    assert bool(jnp.all(jnp.isfinite(out)))
    print("KERNEL_OK")
</pallas_src>

<mosaic_0001>
module attributes {stable_mosaic.version = 11 : i64} {
  func.func @_hyper_ln_kernel(%arg0: i32, %arg1: memref<8x128xf32, #tpu.memory_space<vmem>>, %arg2: memref<8x128xf32, #tpu.memory_space<vmem>>, %arg3: memref<128x128xbf16, #tpu.memory_space<vmem>>, %arg4: memref<128x128xbf16, #tpu.memory_space<vmem>>, %arg5: memref<8x128xf32, #tpu.memory_space<vmem>>) attributes {dimension_semantics = [#tpu.dimension_semantics<parallel>], iteration_bounds = array<i64: 1>, scalar_prefetch = 0 : i64, scratch_operands = 0 : i64, tpu.core_type = #tpu.core_type<tc>, window_params = [{transform_indices = @transform_0, window_bounds = array<i64: 8, 128>}, {pipeline_mode = #tpu.pipeline_mode<synchronous>, transform_indices = @transform_1, window_bounds = array<i64: 8, 128>}, {pipeline_mode = #tpu.pipeline_mode<synchronous>, transform_indices = @transform_2, window_bounds = array<i64: 128, 128>}, {pipeline_mode = #tpu.pipeline_mode<synchronous>, transform_indices = @transform_3, window_bounds = array<i64: 128, 128>}, {transform_indices = @transform_4, window_bounds = array<i64: 8, 128>}]} {
    %c0 = arith.constant 0 : index
    %c0_0 = arith.constant 0 : index
    %0 = vector.load %arg1[%c0, %c0_0] : memref<8x128xf32, #tpu.memory_space<vmem>>, vector<8x128xf32>
    %c0_1 = arith.constant 0 : index
    %c0_2 = arith.constant 0 : index
    %1 = vector.load %arg3[%c0_1, %c0_2] : memref<128x128xbf16, #tpu.memory_space<vmem>>, vector<128x128xbf16>
    %c0_3 = arith.constant 0 : index
    %c0_4 = arith.constant 0 : index
    %2 = vector.load %arg4[%c0_3, %c0_4] : memref<128x128xbf16, #tpu.memory_space<vmem>>, vector<128x128xbf16>
    %c0_5 = arith.constant 0 : index
    %c0_6 = arith.constant 0 : index
    %3 = vector.load %arg2[%c0_5, %c0_6] : memref<8x128xf32, #tpu.memory_space<vmem>>, vector<1x128xf32>
    %c1 = arith.constant 1 : index
    %c0_7 = arith.constant 0 : index
    %4 = vector.load %arg2[%c1, %c0_7] : memref<8x128xf32, #tpu.memory_space<vmem>>, vector<1x128xf32>
    %c2 = arith.constant 2 : index
    %c0_8 = arith.constant 0 : index
    %5 = vector.load %arg2[%c2, %c0_8] : memref<8x128xf32, #tpu.memory_space<vmem>>, vector<1x128xf32>
    %c3 = arith.constant 3 : index
    %c0_9 = arith.constant 0 : index
    %6 = vector.load %arg2[%c3, %c0_9] : memref<8x128xf32, #tpu.memory_space<vmem>>, vector<1x128xf32>
    %7 = arith.truncf %0 : vector<8x128xf32> to vector<8x128xbf16>
    %cst = arith.constant dense<0.000000e+00> : vector<8x128xf32>
    %8 = tpu.matmul %7, %1, %cst {dimension_numbers = #tpu.dot_dimension_numbers<[1], [0], [0], [1], [0, 0, 1, 1], [], []>} : vector<8x128xbf16>, vector<128x128xbf16>, vector<8x128xf32> -> vector<8x128xf32>
    %9 = arith.mulf %0, %0 : vector<8x128xf32>
    %10 = arith.truncf %9 : vector<8x128xf32> to vector<8x128xbf16>
    %cst_10 = arith.constant dense<0.000000e+00> : vector<8x128xf32>
    %11 = tpu.matmul %10, %1, %cst_10 {dimension_numbers = #tpu.dot_dimension_numbers<[1], [0], [0], [1], [0, 0, 1, 1], [], []>} : vector<8x128xbf16>, vector<128x128xbf16>, vector<8x128xf32> -> vector<8x128xf32>
    %cst_11 = arith.constant 1.000000e-30 : f32
    %12 = vector.broadcast %cst_11 : f32 to vector<8x128xf32>
    %13 = arith.maximumf %11, %12 : vector<8x128xf32>
    %14 = math.rsqrt %13 : vector<8x128xf32>
    %15 = arith.mulf %13, %14 : vector<8x128xf32>
    %cst_12 = arith.constant 0.99999988 : f32
    %16 = vector.broadcast %cst_12 : f32 to vector<8x128xf32>
    %17 = arith.minimumf %15, %16 : vector<8x128xf32>
    %cst_13 = arith.constant 2.000000e+00 : f32
    %18 = vector.broadcast %cst_13 : f32 to vector<8x128xf32>
    %19 = arith.mulf %18, %17 : vector<8x128xf32>
    %cst_14 = arith.constant 1.000000e+00 : f32
    %20 = vector.broadcast %cst_14 : f32 to vector<8x128xf32>
    %21 = arith.subf %20, %17 : vector<8x128xf32>
    %22 = tpu.reciprocal %21 {approx = true} : vector<8x128xf32> -> vector<8x128xf32>
    %23 = arith.mulf %19, %22 : vector<8x128xf32>
    %24 = math.log1p %23 : vector<8x128xf32>
    %cst_15 = arith.constant 5.000000e-01 : f32
    %25 = vector.broadcast %cst_15 : f32 to vector<8x128xf32>
    %26 = arith.mulf %25, %24 : vector<8x128xf32>
    %27 = arith.mulf %26, %14 : vector<8x128xf32>
    %28 = arith.mulf %27, %8 : vector<8x128xf32>
    %cst_16 = arith.constant 3.125000e-02 : f32
    %29 = vector.broadcast %cst_16 : f32 to vector<8x128xf32>
    %30 = arith.mulf %28, %29 : vector<8x128xf32>
    %31 = arith.mulf %27, %27 : vector<8x128xf32>
    %32 = arith.mulf %31, %11 : vector<8x128xf32>
    %33 = arith.mulf %30, %30 : vector<8x128xf32>
    %cst_17 = arith.constant 3.200000e+01 : f32
    %34 = vector.broadcast %cst_17 : f32 to vector<8x128xf32>
    %35 = arith.mulf %34, %33 : vector<8x128xf32>
    %36 = arith.subf %32, %35 : vector<8x128xf32>
    %cst_18 = arith.constant 0.000000e+00 : f32
    %37 = vector.broadcast %cst_18 : f32 to vector<8x128xf32>
    %38 = arith.maximumf %36, %37 : vector<8x128xf32>
    %cst_19 = arith.constant 0.0322580636 : f32
    %39 = vector.broadcast %cst_19 : f32 to vector<8x128xf32>
    %40 = arith.mulf %38, %39 : vector<8x128xf32>
    %41 = math.sqrt %40 : vector<8x128xf32>
    %42 = arith.mulf %27, %0 : vector<8x128xf32>
    %43 = arith.subf %42, %30 : vector<8x128xf32>
    %cst_20 = arith.constant 9.99999997E-7 : f32
    %44 = vector.broadcast %cst_20 : f32 to vector<8x128xf32>
    %45 = arith.addf %41, %44 : vector<8x128xf32>
    %46 = tpu.reciprocal %45 {approx = true} : vector<8x128xf32> -> vector<8x128xf32>
    %47 = arith.mulf %43, %46 : vector<8x128xf32>
    %48 = vector.broadcast %3 : vector<1x128xf32> to vector<8x128xf32>
    %49 = arith.mulf %48, %47 : vector<8x128xf32>
    %50 = vector.broadcast %4 : vector<1x128xf32> to vector<8x128xf32>
    %51 = arith.addf %49, %50 : vector<8x128xf32>
    %52 = arith.mulf %51, %51 : vector<8x128xf32>
    %53 = arith.truncf %52 : vector<8x128xf32> to vector<8x128xbf16>
    %cst_21 = arith.constant dense<0.000000e+00> : vector<8x128xf32>
    %54 = tpu.matmul %53, %1, %cst_21 {dimension_numbers = #tpu.dot_dimension_numbers<[1], [0], [0], [1], [0, 0, 1, 1], [], []>} : vector<8x128xbf16>, vector<128x128xbf16>, vector<8x128xf32> -> vector<8x128xf32>
    %cst_22 = arith.constant 1.000000e-30 : f32
    %55 = vector.broadcast %cst_22 : f32 to vector<8x128xf32>
    %56 = arith.maximumf %54, %55 : vector<8x128xf32>
    %57 = math.rsqrt %56 : vector<8x128xf32>
    %58 = arith.mulf %56, %57 : vector<8x128xf32>
    %59 = math.tanh %58 : vector<8x128xf32>
    %60 = arith.mulf %59, %57 : vector<8x128xf32>
    %61 = arith.mulf %51, %60 : vector<8x128xf32>
    %62 = arith.truncf %51 : vector<8x128xf32> to vector<8x128xbf16>
    %cst_23 = arith.constant dense<0.000000e+00> : vector<8x128xf32>
    %63 = tpu.matmul %62, %2, %cst_23 {dimension_numbers = #tpu.dot_dimension_numbers<[1], [0], [0], [1], [0, 0, 1, 1], [], []>} : vector<8x128xbf16>, vector<128x128xbf16>, vector<8x128xf32> -> vector<8x128xf32>
    %64 = arith.mulf %60, %63 : vector<8x128xf32>
    %65 = arith.mulf %59, %59 : vector<8x128xf32>
    %cst_24 = arith.constant 2.000000e+00 : f32
    %66 = vector.broadcast %cst_24 : f32 to vector<8x128xf32>
    %67 = arith.mulf %66, %64 : vector<8x128xf32>
    %cst_25 = arith.constant 1.000000e+00 : f32
    %68 = vector.broadcast %cst_25 : f32 to vector<8x128xf32>
    %69 = arith.addf %68, %67 : vector<8x128xf32>
    %70 = vector.broadcast %6 : vector<1x128xf32> to vector<8x128xf32>
    %71 = arith.addf %69, %70 : vector<8x128xf32>
    %72 = arith.mulf %71, %61 : vector<8x128xf32>
    %cst_26 = arith.constant 1.000000e+00 : f32
    %73 = vector.broadcast %cst_26 : f32 to vector<8x128xf32>
    %74 = arith.subf %73, %65 : vector<8x128xf32>
    %75 = vector.broadcast %5 : vector<1x128xf32> to vector<8x128xf32>
    %76 = arith.mulf %74, %75 : vector<8x128xf32>
    %77 = arith.addf %72, %76 : vector<8x128xf32>
    %cst_27 = arith.constant 2.000000e+00 : f32
    %78 = vector.broadcast %cst_27 : f32 to vector<8x128xf32>
    %79 = arith.mulf %78, %64 : vector<8x128xf32>
    %cst_28 = arith.constant 1.000000e+00 : f32
    %80 = vector.broadcast %cst_28 : f32 to vector<8x128xf32>
    %81 = arith.addf %80, %79 : vector<8x128xf32>
    %82 = vector.broadcast %6 : vector<1x128xf32> to vector<8x128xf32>
    %83 = arith.mulf %65, %82 : vector<8x128xf32>
    %84 = arith.addf %81, %83 : vector<8x128xf32>
    %cst_29 = arith.constant 1.000000e-15 : f32
    %85 = vector.broadcast %cst_29 : f32 to vector<8x128xf32>
    %86 = arith.maximumf %84, %85 : vector<8x128xf32>
    %87 = tpu.reciprocal %86 {approx = true} : vector<8x128xf32> -> vector<8x128xf32>
    %88 = arith.mulf %77, %87 : vector<8x128xf32>
    %c0_30 = arith.constant 0 : index
    %c0_31 = arith.constant 0 : index
    %89 = vector.load %arg5[%c0_30, %c0_31] : memref<8x128xf32, #tpu.memory_space<vmem>>, vector<8x128xf32>
    tpu.vector_store %arg5[%c0_30, %c0_31], %88 {strides = array<i32>} : memref<8x128xf32, #tpu.memory_space<vmem>>, vector<8x128xf32>,
    return
  }
  func.func @transform_0(%arg0: i32) -> (i32, i32) {
    %c0_i32 = arith.constant 0 : i32
    %c0_i32_0 = arith.constant 0 : i32
    return %arg0, %c0_i32 : i32, i32
  }
  func.func @transform_1(%arg0: i32) -> (i32, i32) {
    %c0_i32 = arith.constant 0 : i32
    %c0_i32_0 = arith.constant 0 : i32
    %c0_i32_1 = arith.constant 0 : i32
    return %c0_i32, %c0_i32_0 : i32, i32
  }
  func.func @transform_2(%arg0: i32) -> (i32, i32) {
    %c0_i32 = arith.constant 0 : i32
    %c0_i32_0 = arith.constant 0 : i32
    %c0_i32_1 = arith.constant 0 : i32
    return %c0_i32, %c0_i32_0 : i32, i32
  }
  func.func @transform_3(%arg0: i32) -> (i32, i32) {
    %c0_i32 = arith.constant 0 : i32
    %c0_i32_0 = arith.constant 0 : i32
    %c0_i32_1 = arith.constant 0 : i32
    return %c0_i32, %c0_i32_0 : i32, i32
  }
  func.func @transform_4(%arg0: i32) -> (i32, i32) {
    %c0_i32 = arith.constant 0 : i32
    %c0_i32_0 = arith.constant 0 : i32
    return %arg0, %c0_i32 : i32, i32
  }
}

</mosaic_0001>

<llo_original>
// kernel: tpu_custom_call.1
$region0: #{tpu_custom_call.1}
  #allocation0 [shape = 'u32[]', space=smem, size = 0x4, offset = 0x4, fixed_abs, tag = 'smem constant byte address 0x4 - core index']
  #allocation1 [shape = 'u32[72,128]{1,0:T(1,128)}', space=vmem, size = 0x9000, scoped, tag = 'internal scratch']
  %s0 = inlined_call_operand.hbm [shape: f32[8,128], index: 0, kind: input, shape index: {}]
  %s1 = inlined_call_operand.hbm [shape: f32[8,128], index: 1, kind: input, shape index: {}]
  %s2 = inlined_call_operand.hbm [shape: bf16[128,128], index: 2, kind: input, shape index: {}]
  %s3 = inlined_call_operand.hbm [shape: bf16[128,128], index: 3, kind: input, shape index: {}]
  %s4 = inlined_call_operand.hbm [shape: f32[8,128], index: 4, kind: output, shape index: {}]
  %s5 = sld [smem:[#allocation0]]
  $region42: #{tpu_custom_call.1} parent=0
    _
  %s7 = ssub.s32 1, %s5
  %s8 = scalar_select 0, %s7, %s5
  $region1: #{tpu_custom_call.1} parent=0
    #allocation2 [shape = 'u8[4096]{0}', space=vmem, size = 0x1000, scoped, tag = 'input window, operand 0, single buffered']
    #allocation3 [shape = 's32[1]{0}', space=sflag, size = 0x4, scoped, tag = 'scoped memory for tpu_custom_call.1']
    #allocation4 [shape = 's32[1]{0}', space=sflag, size = 0x4, scoped, tag = 'scoped memory for tpu_custom_call.1']
    #allocation5 [shape = 'u8[4096]{0}', space=vmem, size = 0x1000, scoped, tag = 'input window, operand 1, single buffered']
    #allocation6 [shape = 's32[1]{0}', space=sflag, size = 0x4, scoped, tag = 'scoped memory for tpu_custom_call.1']
    #allocation7 [shape = 'u8[32768]{0}', space=vmem, size = 0x8000, scoped, tag = 'input window, operand 2, single buffered']
    #allocation8 [shape = 'u8[32768]{0}', space=vmem, size = 0x8000, scoped, tag = 'input window, operand 3, single buffered']
    #allocation9 [shape = 's32[1]{0}', space=sflag, size = 0x4, scoped, tag = 'scoped memory for tpu_custom_call.1']
    #allocation10 [shape = 'u8[4096]{0}', space=vmem, size = 0x1000, scoped, tag = 'output window, operand 0, single buffered']
    %9 = vsyncpa [#allocation3], 0
    %10 = vsyncpa [#allocation6], 0
    %11 = vsyncpa [#allocation9], 0
    %12 = vsyncpa [#allocation4], 0
    // Predicated region
    $region2: #{tpu_custom_call.1} parent=1 // pred_check
      _
    $region3: #{tpu_custom_call.1} parent=1 // pred_check_branch
      %14 = sbr.rel (0) target = $region5
    $region4: #{tpu_custom_call.1} parent=1 // pred_region
      %16 = vsyncadd [#allocation3], 0
      %s18 = sshll.u32 %s0, 4
      %s19 = int_to_ptr.hbm [resolvable:$true] %s18
      %s20 = sshll.u32 [#allocation2], 4
      %s21 = int_to_ptr.vmem [resolvable:$true] %s20
      %23 = dma.hbm_to_vmem [thread:$0]  %s19, 128, %s21, [#allocation3]
    $region5: #{tpu_custom_call.1} parent=1 // pred_fallthru
      _
    // Predicated region
    $region6: #{tpu_custom_call.1} parent=1 // pred_check
      _
    $region7: #{tpu_custom_call.1} parent=1 // pred_check_branch
      %25 = sbr.rel (0) target = $region9
    $region8: #{tpu_custom_call.1} parent=1 // pred_region
      %27 = vsyncadd [#allocation6], 0
      %s29 = sshll.u32 %s1, 4
      %s30 = int_to_ptr.hbm [resolvable:$true] %s29
      %s31 = sshll.u32 [#allocation5], 4
      %s32 = int_to_ptr.vmem [resolvable:$true] %s31
      %34 = dma.hbm_to_vmem [thread:$0]  %s30, 128, %s32, [#allocation6]
    $region9: #{tpu_custom_call.1} parent=1 // pred_fallthru
      _
    // Predicated region
    $region10: #{tpu_custom_call.1} parent=1 // pred_check
      _
    $region11: #{tpu_custom_call.1} parent=1 // pred_check_branch
      %36 = sbr.rel (0) target = $region13
    $region12: #{tpu_custom_call.1} parent=1 // pred_region
      %38 = vsyncadd [#allocation6], 0
      %s39 = sshll.u32 %s2, 4
      %s40 = int_to_ptr.hbm [resolvable:$true] %s39
      %s41 = sshll.u32 [#allocation7], 4
      %s42 = int_to_ptr.vmem [resolvable:$true] %s41
      %47 = dma.hbm_to_vmem [thread:$0]  %s40, 1024, %s42, [#allocation6], 64, 64, 4
    $region13: #{tpu_custom_call.1} parent=1 // pred_fallthru
      _
    // Predicated region
    $region14: #{tpu_custom_call.1} parent=1 // pred_check
      _
    $region15: #{tpu_custom_call.1} parent=1 // pred_check_branch
      %49 = sbr.rel (0) target = $region17
    $region16: #{tpu_custom_call.1} parent=1 // pred_region
      %51 = vsyncadd [#allocation9], 0
      %s52 = sshll.u32 %s3, 4
      %s53 = int_to_ptr.hbm [resolvable:$true] %s52
      %s54 = sshll.u32 [#allocation8], 4
      %s55 = int_to_ptr.vmem [resolvable:$true] %s54
      %60 = dma.hbm_to_vmem [thread:$0]  %s53, 1024, %s55, [#allocation9], 64, 64, 4
    $region17: #{tpu_custom_call.1} parent=1 // pred_fallthru
      _
    // Predicated region
    $region18: #{tpu_custom_call.1} parent=1 // pred_check
      _
    $region19: #{tpu_custom_call.1} parent=1 // pred_check_branch
      %62 = sbr.rel (0) target = $region21
    $region20: #{tpu_custom_call.1} parent=1 // pred_region
      %64 = dma.done [#allocation3], 128
    $region21: #{tpu_custom_call.1} parent=1 // pred_fallthru
      _
    // Predicated region
    $region22: #{tpu_custom_call.1} parent=1 // pred_check
      _
    $region23: #{tpu_custom_call.1} parent=1 // pred_check_branch
      %66 = sbr.rel (0) target = $region25
    $region24: #{tpu_custom_call.1} parent=1 // pred_region
      %68 = dma.done [#allocation6], 128
    $region25: #{tpu_custom_call.1} parent=1 // pred_fallthru
      _
    // Predicated region
    $region26: #{tpu_custom_call.1} parent=1 // pred_check
      _
    $region27: #{tpu_custom_call.1} parent=1 // pred_check_branch
      %70 = sbr.rel (0) target = $region29
    $region28: #{tpu_custom_call.1} parent=1 // pred_region
      %72 = dma.done [#allocation6], 1024
    $region29: #{tpu_custom_call.1} parent=1 // pred_fallthru
      _
    // Predicated region
    $region30: #{tpu_custom_call.1} parent=1 // pred_check
      _
    $region31: #{tpu_custom_call.1} parent=1 // pred_check_branch
      %74 = sbr.rel (0) target = $region33
    $region32: #{tpu_custom_call.1} parent=1 // pred_region
      %76 = dma.done [#allocation9], 1024
    $region33: #{tpu_custom_call.1} parent=1 // pred_fallthru
      _
    %v77 = vld [vmem:[#allocation2] sm:$0xff]
    %v78 = vld [vmem:[#allocation7] sm:$0xf]
    %v79 = vld [vmem:[#allocation7 + $0x4] sm:$0xf]
    %v80 = vld [vmem:[#allocation7 + $0x8] sm:$0xf]
    %v81 = vld [vmem:[#allocation7 + $0xc] sm:$0xf]
    %v82 = vld [vmem:[#allocation7 + $0x10] sm:$0xf]
    %v83 = vld [vmem:[#allocation7 + $0x14] sm:$0xf]
    %v84 = vld [vmem:[#allocation7 + $0x18] sm:$0xf]
    %v85 = vld [vmem:[#allocation7 + $0x1c] sm:$0xf]
    %v86 = vld [vmem:[#allocation7 + $0x20] sm:$0xf]
    %v87 = vld [vmem:[#allocation7 + $0x24] sm:$0xf]
    %v88 = vld [vmem:[#allocation7 + $0x28] sm:$0xf]
    %v89 = vld [vmem:[#allocation7 + $0x2c] sm:$0xf]
    %v90 = vld [vmem:[#allocation7 + $0x30] sm:$0xf]
    %v91 = vld [vmem:[#allocation7 + $0x34] sm:$0xf]
    %v92 = vld [vmem:[#allocation7 + $0x38] sm:$0xf]
    %v93 = vld [vmem:[#allocation7 + $0x3c] sm:$0xf]
    %v94 = vld [vmem:[#allocation8] sm:$0xf]
    %v95 = vld [vmem:[#allocation8 + $0x4] sm:$0xf]
    %v96 = vld [vmem:[#allocation8 + $0x8] sm:$0xf]
    %v97 = vld [vmem:[#allocation8 + $0xc] sm:$0xf]
    %v98 = vld [vmem:[#allocation8 + $0x10] sm:$0xf]
    %v99 = vld [vmem:[#allocation8 + $0x14] sm:$0xf]
    %v100 = vld [vmem:[#allocation8 + $0x18] sm:$0xf]
    %v101 = vld [vmem:[#allocation8 + $0x1c] sm:$0xf]
    %v102 = vld [vmem:[#allocation8 + $0x20] sm:$0xf]
    %v103 = vld [vmem:[#allocation8 + $0x24] sm:$0xf]
    %v104 = vld [vmem:[#allocation8 + $0x28] sm:$0xf]
    %v105 = vld [vmem:[#allocation8 + $0x2c] sm:$0xf]
    %v106 = vld [vmem:[#allocation8 + $0x30] sm:$0xf]
    %v107 = vld [vmem:[#allocation8 + $0x34] sm:$0xf]
    %v108 = vld [vmem:[#allocation8 + $0x38] sm:$0xf]
    %v109 = vld [vmem:[#allocation8 + $0x3c] sm:$0xf]
    %v110 = vld [vmem:[#allocation5] sm:$0x1]
    %v111 = vld [vmem:[#allocation5 + $0x1] sm:$0x1]
    %v112 = vld [vmem:[#allocation5 + $0x2] sm:$0x1]
    %v113 = vld [vmem:[#allocation5 + $0x3] sm:$0x1]
    %v114 = vpack.c.bf16 %v77, %v77
    %v131 = vunpack.c.l.b16 %v78
    %v132 = vunpack.c.l.b16 %v79
    %v133 = vunpack.c.l.b16 %v80
    %v134 = vunpack.c.l.b16 %v81
    %v135 = vunpack.c.l.b16 %v82
    %v136 = vunpack.c.l.b16 %v83
    %v137 = vunpack.c.l.b16 %v84
    %v138 = vunpack.c.l.b16 %v85
    %v139 = vunpack.c.l.b16 %v86
    %v140 = vunpack.c.l.b16 %v87
    %v141 = vunpack.c.l.b16 %v88
    %v142 = vunpack.c.l.b16 %v89
    %v143 = vunpack.c.l.b16 %v90
    %v144 = vunpack.c.l.b16 %v91
    %v145 = vunpack.c.l.b16 %v92
    %v146 = vunpack.c.l.b16 %v93
    %v147 = vpack.c.b16 %v132, %v131
    %v148 = vpack.c.b16 %v134, %v133
    %v149 = vpack.c.b16 %v136, %v135
    %v150 = vpack.c.b16 %v138, %v137
    %v151 = vpack.c.b16 %v140, %v139
    %v152 = vpack.c.b16 %v142, %v141
    %v153 = vpack.c.b16 %v144, %v143
    %v154 = vpack.c.b16 %v146, %v145
    %163 = vmatpush.bf16.msra.mxu0 %v154
    %164 = vmatpush.bf16.msra.mxu0 %v153
    %165 = vmatpush.bf16.msra.mxu0 %v152
    %166 = vmatpush.bf16.msra.mxu0 %v151
    %167 = vmatpush.bf16.msra.mxu0 %v150
    %168 = vmatpush.bf16.msra.mxu0 %v149
    %169 = vmatpush.bf16.msra.mxu0 %v148
    %170 = vmatpush.bf16.msra.mxu0 %v147
    %171 = vmatmul.bf16.gmra.mxu0 %v114
    %v172 = vpop.f32.mrf.mxu0
    %v173 = vadd.f32 0.0, %v172
    %v174 = vpop.f32.mrf.mxu0
    %175 = vdwg.mxu0
    %v176 = vmul.f32 %v77, %v77
    %v177 = vpack.c.bf16 %v176, %v176
    %178 = vmatpush.bf16.msra.mxu0 %v154
    %179 = vmatpush.bf16.msra.mxu0 %v153
    %180 = vmatpush.bf16.msra.mxu0 %v152
    %181 = vmatpush.bf16.msra.mxu0 %v151
    %182 = vmatpush.bf16.msra.mxu0 %v150
    %183 = vmatpush.bf16.msra.mxu0 %v149
    %184 = vmatpush.bf16.msra.mxu0 %v148
    %185 = vmatpush.bf16.msra.mxu0 %v147
    %186 = vmatmul.bf16.gmra.mxu0 %v177
    %v187 = vpop.f32.mrf.mxu0
    %v188 = vadd.f32 0.0, %v187
    %v189 = vpop.f32.mrf.mxu0
    %190 = vdwg.mxu0
    %v191 = vmax.f32 %v188, 1e-30
    %v192 = vrsqrt.pop %v191
    %v193 = vmul.f32 %v192, %v191
    %v194 = vmul.f32 %v193, %v192
    %v195 = vmul.f32 0.5, %v194
    %v196 = vsub.f32 1.5, %v195
    %v197 = vmul.f32 %v192, %v196
    %vm198 = vweird.f32 %v191
    %vm199 = vweird.f32 %v192
    %vm200 = vmor %vm198, %vm199
    %v201 = vsel %vm200, %v192, %v197
    %v202 = vmul.f32 %v191, %v201
    %v203 = vmin.f32 %v202, 0.9999999
    %v204 = vmul.f32 %v203, 2.0
    %v205 = vsub.f32 1.0, %v203
    %v206 = vrcp.pop %v205
    %v207 = vmul.f32 %v204, %v206
    %v208 = vadd.f32 %v207, 1.0
    %v209 = vlog2.pop %v208
    %v210 = vmul.f32 %v209, 0.6931472
    %v211 = vmul.f32 -0.5, %v207
    %v212 = vadd.f32 %v211, 1.0
    %v213 = vmul.f32 %v212, %v207
    %v214 = vand.u32 2147483647, %v207
    %vm215 = vcmp.lt.f32.partialorder %v214, 0.0004427343
    %v216 = vsel %vm215, %v213, %v210
    %v217 = vmul.f32 %v216, 0.5
    %v218 = vmul.f32 %v217, %v201
    %v219 = vmul.f32 %v218, %v173
    %v220 = vmul.f32 %v219, 0.03125
    %v221 = vmul.f32 %v218, %v218
    %v222 = vmul.f32 %v221, %v188
    %v223 = vmul.f32 %v220, %v220
    %v224 = vmul.f32 %v223, 32.0
    %v225 = vsub.f32 %v222, %v224
    %v226 = vmax.f32 %v225, 0.0
    %v227 = vmul.f32 %v226, 0.032258064
    %v228 = vrsqrt.pop %v227
    %v229 = vmul.f32 %v228, %v227
    %v230 = vmul.f32 %v229, %v228
    %v231 = vmul.f32 0.5, %v230
    %v232 = vsub.f32 1.5, %v231
    %v233 = vmul.f32 %v228, %v232
    %v234 = vmul.f32 %v227, %v233
    %vm235 = vcmp.eq.f32.partialorder %v227, inf
    %v236 = vsel %vm235, %v227, %v234
    %vm237 = vcmp.eq.f32.partialorder %v227, 0.0
    %v238 = vand.u32 %v227, 2147483648
    %v239 = vsel %vm237, %v238, %v236
    %v240 = vmul.f32 %v218, %v77
    %v241 = vsub.f32 %v240, %v220
    %v242 = vadd.f32 %v239, 1e-06
    %v243 = vrcp.pop %v242
    %v244 = vmul.f32 %v241, %v243
    %v245 = vperm.slane %v110, 0
    %v246 = vmul.f32 %v245, %v244
    %v247 = vperm.slane %v111, 0
    %v248 = vadd.f32 %v246, %v247
    %v249 = vmul.f32 %v248, %v248
    %v250 = vpack.c.bf16 %v249, %v249
    %251 = vmatpush.bf16.msra.mxu0 %v154
    %252 = vmatpush.bf16.msra.mxu0 %v153
    %253 = vmatpush.bf16.msra.mxu0 %v152
    %254 = vmatpush.bf16.msra.mxu0 %v151
    %255 = vmatpush.bf16.msra.mxu0 %v150
    %256 = vmatpush.bf16.msra.mxu0 %v149
    %257 = vmatpush.bf16.msra.mxu0 %v148
    %258 = vmatpush.bf16.msra.mxu0 %v147
    %259 = vmatmul.bf16.gmra.mxu0 %v250
    %v260 = vpop.f32.mrf.mxu0
    %v261 = vadd.f32 0.0, %v260
    %v262 = vpop.f32.mrf.mxu0
    %263 = vdwg.mxu0
    %v264 = vmax.f32 %v261, 1e-30
    %v265 = vrsqrt.pop %v264
    %v266 = vmul.f32 %v265, %v264
    %v267 = vmul.f32 %v266, %v265
    %v268 = vmul.f32 0.5, %v267
    %v269 = vsub.f32 1.5, %v268
    %v270 = vmul.f32 %v265, %v269
    %vm271 = vweird.f32 %v264
    %vm272 = vweird.f32 %v265
    %vm273 = vmor %vm271, %vm272
    %v274 = vsel %vm273, %v265, %v270
    %v275 = vmul.f32 %v264, %v274
    %v276 = vtanh.pop %v275
    %v277 = vmul.f32 %v276, %v274
    %v278 = vmul.f32 %v248, %v277
    %v279 = vpack.c.bf16 %v248, %v248
    %v296 = vunpack.c.l.b16 %v94
    %v297 = vunpack.c.l.b16 %v95
    %v298 = vunpack.c.l.b16 %v96
    %v299 = vunpack.c.l.b16 %v97
    %v300 = vunpack.c.l.b16 %v98
    %v301 = vunpack.c.l.b16 %v99
    %v302 = vunpack.c.l.b16 %v100
    %v303 = vunpack.c.l.b16 %v101
    %v304 = vunpack.c.l.b16 %v102
    %v305 = vunpack.c.l.b16 %v103
    %v306 = vunpack.c.l.b16 %v104
    %v307 = vunpack.c.l.b16 %v105
    %v308 = vunpack.c.l.b16 %v106
    %v309 = vunpack.c.l.b16 %v107
    %v310 = vunpack.c.l.b16 %v108
    %v311 = vunpack.c.l.b16 %v109
    %v312 = vpack.c.b16 %v297, %v296
    %v313 = vpack.c.b16 %v299, %v298
    %v314 = vpack.c.b16 %v301, %v300
    %v315 = vpack.c.b16 %v303, %v302
    %v316 = vpack.c.b16 %v305, %v304
    %v317 = vpack.c.b16 %v307, %v306
    %v318 = vpack.c.b16 %v309, %v308
    %v319 = vpack.c.b16 %v311, %v310
    %328 = vmatpush.bf16.msra.mxu0 %v319
    %329 = vmatpush.bf16.msra.mxu0 %v318
    %330 = vmatpush.bf16.msra.mxu0 %v317
    %331 = vmatpush.bf16.msra.mxu0 %v316
    %332 = vmatpush.bf16.msra.mxu0 %v315
    %333 = vmatpush.bf16.msra.mxu0 %v314
    %334 = vmatpush.bf16.msra.mxu0 %v313
    %335 = vmatpush.bf16.msra.mxu0 %v312
    %336 = vmatmul.bf16.gmra.mxu0 %v279
    %v337 = vpop.f32.mrf.mxu0
    %v338 = vadd.f32 0.0, %v337
    %v339 = vpop.f32.mrf.mxu0
    %340 = vdwg.mxu0
    %v341 = vmul.f32 %v277, %v338
    %v342 = vmul.f32 %v276, %v276
    %v343 = vmul.f32 %v341, 2.0
    %v344 = vadd.f32 %v343, 1.0
    %v345 = vperm.slane %v113, 0
    %v346 = vadd.f32 %v344, %v345
    %v347 = vmul.f32 %v346, %v278
    %v348 = vsub.f32 1.0, %v342
    %v349 = vperm.slane %v112, 0
    %v350 = vmul.f32 %v348, %v349
    %v351 = vadd.f32 %v347, %v350
    %v352 = vmul.f32 %v342, %v345
    %v353 = vadd.f32 %v344, %v352
    %v354 = vmax.f32 %v353, 1e-15
    %v355 = vrcp.pop %v354
    %v356 = vmul.f32 %v351, %v355
    %357 = vst [vmem:[#allocation10] sm:$0xff] %v356
    // Predicated region
    $region34: #{tpu_custom_call.1} parent=1 // pred_check
      _
    $region35: #{tpu_custom_call.1} parent=1 // pred_check_branch
      %359 = sbr.rel (0) target = $region37
    $region36: #{tpu_custom_call.1} parent=1 // pred_region
      %361 = vsyncadd [#allocation4], 0
      %s363 = sshll.u32 [#allocation10], 4
      %s364 = int_to_ptr.vmem [resolvable:$true] %s363
      %s365 = sshll.u32 %s4, 4
      %s366 = int_to_ptr.hbm [resolvable:$true] %s365
      %368 = dma.vmem_to_hbm [thread:$0]  %s364, 128, %s366, [#allocation4]
    $region37: #{tpu_custom_call.1} parent=1 // pred_fallthru
      _
    // Predicated region
    $region38: #{tpu_custom_call.1} parent=1 // pred_check
      _
    $region39: #{tpu_custom_call.1} parent=1 // pred_check_branch
      %370 = sbr.rel (0) target = $region41
    $region40: #{tpu_custom_call.1} parent=1 // pred_region
      %372 = dma.done [#allocation4], 128
    $region41: #{tpu_custom_call.1} parent=1 // pred_fallthru
      _
    %373 = vsyncpa [#allocation3], 1
    %374 = vsyncpa [#allocation6], 1
    %375 = vsyncpa [#allocation9], 1
    %376 = vsyncpa [#allocation4], 1

</llo_original>
